<compile_context>
chip_gen: v7x
topology: tpu7x:2x2x1
jax: 0.10.0
libtpu: 0.0.40
codegen_flags: <defaults>
</compile_context>

<pallas_src>
import jax
import jax.numpy as jnp
import numpy as np
from jax.experimental import pallas as pl
from jax.experimental.pallas import tpu as pltpu


# ---------------------------------------------------------------- stage 1 kernel
# One stacked projection matmul (conv_s1 rows [0:S), conv_s11 rows [S:2S)) and the
# channel max-pool of (seg + edge). Everything else is derived in stage 2.
def _proj_pool_kernel(seg_ref, edge_ref, w_ref, b_ref, segs_ref, segc_ref, erow_ref):
    seg = seg_ref[0]                                                    # (C, HW)
    s = segs_ref.shape[1]
    proj = jnp.dot(w_ref[...], seg,
                   preferred_element_type=jnp.float32) + b_ref[...]     # (2S, HW)
    segs_ref[0] = proj[:s]                                              # conv_s1  output
    segc_ref[0] = proj[s:]                                              # conv_s11 output
    erow_ref[0] = jnp.max(seg + edge_ref[0], axis=0, keepdims=True)     # (1, HW) pool of seg+edge


# ---------------------------------------------------------------- stage 2 kernel
def _eagcn_kernel(seg_ref, theta_ref, sigmaT_ref, ecol_ref,
                  wst_ref, bst_ref, wmlp_ref, bmlp_ref, wg2_ref, bg2_ref, sc_ref,
                  out_ref):
    seg = seg_ref[0]          # (C, HW)   == seg_ori flattened
    theta = theta_ref[0]      # (HW, S)   .view reinterpretation of conv_s1 output
    sigmaT = sigmaT_ref[0]    # (HW, S)   .view reinterpretation of conv_s11 output
    ecol = ecol_ref[0]        # (HW, 1)   max_c(seg+edge) as a column

    hw = seg.shape[1]
    s = theta.shape[1]

    # Recompute theta_T / sigma from the resident seg block (stacked MXU matmul; avoids
    # DMAing both layouts of the projections from HBM).
    proj = jnp.dot(wst_ref[...], seg,
                   preferred_element_type=jnp.float32) + bst_ref[...]   # (2S, HW)
    theta_T = proj[:s]                                                  # (S, HW)
    sigma = proj[s:]                                                    # (S, HW)

    # ---- channel-attention branch --------------------------------------------
    mean_c = jnp.sum(seg, axis=1, keepdims=True) * (1.0 / hw)           # (C, 1)  avgpool
    ca = jnp.maximum(
        jnp.dot(wmlp_ref[...], mean_c, preferred_element_type=jnp.float32)
        + bmlp_ref[...], 0.0)                                           # (S, 1)  relu(mlp)
    # theta @ (ca ca^T) @ theta_T factorized rank-1: (theta @ ca) * (ca^T @ theta_T)
    v = jnp.dot(theta, ca, preferred_element_type=jnp.float32)          # (HW, 1)
    u = jnp.sum(ca * theta_T, axis=0, keepdims=True)                    # (1, HW)
    pre_c = v * u                                                       # (HW, HW)
    m1 = jnp.max(pre_c, axis=0, keepdims=True)                          # softmax(dim=1)
    e1 = jnp.exp(pre_c - m1)
    sim_c = e1 * pl.reciprocal(jnp.sum(e1, axis=0, keepdims=True), approx=True)

    # ---- spatial-attention branch --------------------------------------------
    sigma_out = jnp.dot(sigmaT, sigma, preferred_element_type=jnp.float32)  # (HW, HW)
    w2 = sc_ref[0]
    b2 = sc_ref[1]
    w3 = sc_ref[2]
    b3 = sc_ref[3]
    seg_ss = w2 * jnp.max(seg, axis=0, keepdims=True) + b2              # conv_s2 -> (1, HW)
    edge_mm = w3 * ecol + b3                                            # conv_s3 -> (HW, 1)
    dsa = (edge_mm * seg_ss) * sigma_out                                # (HW, HW)
    m2 = jnp.max(dsa, axis=0, keepdims=True)
    e2 = jnp.exp(dsa - m2)
    sim_s = e2 * pl.reciprocal(jnp.sum(e2, axis=0, keepdims=True), approx=True)

    similarity = sim_c + sim_s                                          # (HW, HW)

    # ---- GCN (only conv2 + relu + residual is used in the reference forward) --
    seg_similar = jnp.dot(seg, similarity,
                          preferred_element_type=jnp.float32)           # (C, HW)
    gout = jnp.maximum(
        jnp.dot(wg2_ref[...], seg_similar, preferred_element_type=jnp.float32)
        + bg2_ref[...], 0.0)
    # GCN residual (+ seg) then outer residual (+ seg_ori == seg)
    out_ref[0] = gout + seg + seg


# ---------------------------------------------------------------- wrapper
def res_eagcn_forward(seg4, edge4, params):
    n, c, h, w = seg4.shape
    hw = h * w
    num_s = params['w_s1'].shape[0]

    seg = seg4.reshape(n, c, hw).astype(jnp.float32)
    edge = edge4.reshape(n, c, hw).astype(jnp.float32)

    def full(shape):
        nd = len(shape)
        return pl.BlockSpec(shape, lambda b, _nd=nd: (0,) * _nd)

    def batched(shape):
        nd = len(shape)
        return pl.BlockSpec((1,) + shape, lambda b, _nd=nd: (b,) + (0,) * _nd)

    # Stacked projection weights (single MXU matmul per batch element).
    w_stack = jnp.concatenate([params['w_s1'], params['w_s11']], axis=0)   # (2S, C)
    b_stack = jnp.concatenate([params['b_s1'], params['b_s11']], axis=0)   # (2S, 1)
    scalars = jnp.stack([params['w_s2'], params['b_s2'],
                         params['w_s3'], params['b_s3']]).astype(jnp.float32)  # (4,)

    # stage 1: stacked 1x1-conv projections + channel max-pool of (seg+edge)
    seg_s, seg_c, erow = pl.pallas_call(
        _proj_pool_kernel,
        grid=(n,),
        in_specs=[batched((c, hw)), batched((c, hw)),
                  full((2 * num_s, c)), full((2 * num_s, 1))],
        out_specs=[batched((num_s, hw)), batched((num_s, hw)), batched((1, hw))],
        out_shape=[jax.ShapeDtypeStruct((n, num_s, hw), jnp.float32),
                   jax.ShapeDtypeStruct((n, num_s, hw), jnp.float32),
                   jax.ShapeDtypeStruct((n, 1, hw), jnp.float32)],
        compiler_params=pltpu.CompilerParams(dimension_semantics=("parallel",)),
    )(seg, edge, w_stack, b_stack)

    # glue: PyTorch `.view` re-interpretations (raw reshapes, NOT transposes) — free in HBM.
    theta = seg_s.reshape(n, hw, num_s)       # conv_s1 output viewed as (HW, S)
    sigma_T = seg_c.reshape(n, hw, num_s)     # conv_s11 output viewed as (HW, S)
    edge_col = erow.reshape(n, hw, 1)         # (1, HW) row -> (HW, 1) column

    out = pl.pallas_call(
        _eagcn_kernel,
        grid=(n,),
        in_specs=[batched((c, hw)),
                  batched((hw, num_s)), batched((hw, num_s)), batched((hw, 1)),
                  full((2 * num_s, c)), full((2 * num_s, 1)),
                  full((num_s, c)), full((num_s, 1)),
                  full((c, c)), full((c, 1)),
                  pl.BlockSpec(memory_space=pltpu.MemorySpace.SMEM)],
        out_specs=batched((c, hw)),
        out_shape=jax.ShapeDtypeStruct((n, c, hw), jnp.float32),
        compiler_params=pltpu.CompilerParams(dimension_semantics=("parallel",)),
    )(seg, theta, sigma_T, edge_col,
      w_stack, b_stack, params['w_mlp'], params['b_mlp'],
      params['w_g2'], params['b_g2'], scalars)

    return out.reshape(n, c, h, w)


# ---------------------------------------------------------------- pure-JAX reference
def reference(seg4, edge4, p):
    n, c, h, w = seg4.shape
    hw = h * w
    num_s = p['w_s1'].shape[0]
    seg = seg4.reshape(n, c, hw)
    edge = edge4.reshape(n, c, hw)
    seg_s = jnp.einsum('sc,ncp->nsp', p['w_s1'], seg) + p['b_s1'][None]
    theta_T = seg_s
    theta = seg_s.reshape(n, hw, num_s)
    pooled = seg.mean(axis=2)
    ca = jax.nn.relu(pooled @ p['w_mlp'].T + p['b_mlp'][:, 0][None])
    D = ca[:, :, None] @ ca[:, None, :]
    sim_c = jax.nn.softmax((theta @ D) @ theta_T, axis=1)
    seg_c = jnp.einsum('sc,ncp->nsp', p['w_s11'], seg) + p['b_s11'][None]
    sigma = seg_c
    sigma_T = seg_c.reshape(n, hw, num_s)
    sigma_out = sigma_T @ sigma
    edge_m = seg + edge
    maxpool_s = seg.max(axis=1)
    edge_m_pool = edge_m.max(axis=1)
    seg_ss = (p['w_s2'] * maxpool_s + p['b_s2'])[:, None, :]
    edge_mm = (p['w_s3'] * edge_m_pool + p['b_s3'])[:, :, None]
    sim_s = jax.nn.softmax((edge_mm @ seg_ss) * sigma_out, axis=1)
    similarity = sim_c + sim_s
    seg_similar = seg @ similarity
    gout = jax.nn.relu(jnp.einsum('oc,ncp->nop', p['w_g2'], seg_similar) + p['b_g2'][None])
    return (gout + seg).reshape(n, c, h, w) + seg4


if __name__ == "__main__":
    # Small shapes consistent with the module: spatial must equal (mids, mids)
    # because the GCN output is .view(n, num_in, mids, mids).
    n, num_in, plane_mid, mids = 2, 4, 16, 8
    c, num_s, hw = num_in, plane_mid, mids * mids

    key = jax.random.PRNGKey(0)
    ks = jax.random.split(key, 16)

    def rnd(k, shape, scale=0.1):
        return (scale * jax.random.normal(k, shape)).astype(jnp.float32)

    params = {
        'w_s1':  rnd(ks[0], (num_s, c)),  'b_s1':  rnd(ks[1], (num_s, 1)),
        'w_s11': rnd(ks[2], (num_s, c)),  'b_s11': rnd(ks[3], (num_s, 1)),
        'w_mlp': rnd(ks[4], (num_s, c)),  'b_mlp': rnd(ks[5], (num_s, 1)),
        'w_s2':  rnd(ks[6], ()),          'b_s2':  rnd(ks[7], ()),
        'w_s3':  rnd(ks[8], ()),          'b_s3':  rnd(ks[9], ()),
        'w_g2':  rnd(ks[10], (c, c)),     'b_g2':  rnd(ks[11], (c, 1)),
        # TODO(synk): conv1 (GCN), fc, downsample, conv_extend, blocker (BatchNorm2d)
        # are constructed in __init__ but never used in the forward pass, so they are
        # intentionally not instantiated here.
    }

    seg4 = jax.random.normal(ks[12], (n, c, mids, mids), dtype=jnp.float32)
    edge4 = jax.random.normal(ks[13], (n, c, mids, mids), dtype=jnp.float32)

    out = jax.block_until_ready(res_eagcn_forward(seg4, edge4, params))
    ref = jax.block_until_ready(reference(seg4, edge4, params))

    assert out.shape == (n, num_in, mids, mids)
    np.testing.assert_allclose(np.asarray(out), np.asarray(ref), rtol=1e-3, atol=2e-4)
    print("KERNEL_OK")
</pallas_src>

<mosaic_0001>
module attributes {stable_mosaic.version = 11 : i64} {
  func.func @_proj_pool_kernel(%arg0: i32, %arg1: memref<1x4x64xf32, #tpu.memory_space<vmem>>, %arg2: memref<1x4x64xf32, #tpu.memory_space<vmem>>, %arg3: memref<32x4xf32, #tpu.memory_space<vmem>>, %arg4: memref<32x1xf32, #tpu.memory_space<vmem>>, %arg5: memref<1x16x64xf32, #tpu.memory_space<vmem>>, %arg6: memref<1x16x64xf32, #tpu.memory_space<vmem>>, %arg7: memref<1x1x64xf32, #tpu.memory_space<vmem>>) attributes {dimension_semantics = [#tpu.dimension_semantics<parallel>], iteration_bounds = array<i64: 2>, scalar_prefetch = 0 : i64, scratch_operands = 0 : i64, tpu.core_type = #tpu.core_type<tc>, window_params = [{transform_indices = @transform_0, window_bounds = array<i64: 1, 4, 64>}, {transform_indices = @transform_1, window_bounds = array<i64: 1, 4, 64>}, {pipeline_mode = #tpu.pipeline_mode<synchronous>, transform_indices = @transform_2, window_bounds = array<i64: 32, 4>}, {pipeline_mode = #tpu.pipeline_mode<synchronous>, transform_indices = @transform_3, window_bounds = array<i64: 32, 1>}, {transform_indices = @transform_4, window_bounds = array<i64: 1, 16, 64>}, {transform_indices = @transform_5, window_bounds = array<i64: 1, 16, 64>}, {transform_indices = @transform_6, window_bounds = array<i64: 1, 1, 64>}]} {
    %c0 = arith.constant 0 : index
    %c0_0 = arith.constant 0 : index
    %c0_1 = arith.constant 0 : index
    %0 = vector.load %arg1[%c0, %c0_0, %c0_1] : memref<1x4x64xf32, #tpu.memory_space<vmem>>, vector<1x4x64xf32>
    %1 = vector.shape_cast %0 : vector<1x4x64xf32> to vector<4x64xf32>
    %c0_2 = arith.constant 0 : index
    %c0_3 = arith.constant 0 : index
    %2 = vector.load %arg3[%c0_2, %c0_3] : memref<32x4xf32, #tpu.memory_space<vmem>>, vector<32x4xf32>
    %cst = arith.constant dense<0.000000e+00> : vector<32x64xf32>
    %3 = tpu.matmul %2, %1, %cst {dimension_numbers = #tpu.dot_dimension_numbers<[1], [0], [0], [1], [0, 0, 1, 1], [], []>} : vector<32x4xf32>, vector<4x64xf32>, vector<32x64xf32> -> vector<32x64xf32>
    %c0_4 = arith.constant 0 : index
    %c0_5 = arith.constant 0 : index
    %4 = vector.load %arg4[%c0_4, %c0_5] : memref<32x1xf32, #tpu.memory_space<vmem>>, vector<32x1xf32>
    %5 = vector.broadcast %4 : vector<32x1xf32> to vector<32x64xf32>
    %6 = arith.addf %3, %5 : vector<32x64xf32>
    %7 = vector.extract_strided_slice %6 {offsets = [0, 0], sizes = [16, 64], strides = [1, 1]} : vector<32x64xf32> to vector<16x64xf32>
    %c0_6 = arith.constant 0 : index
    %c0_7 = arith.constant 0 : index
    %c0_8 = arith.constant 0 : index
    %8 = vector.load %arg5[%c0_6, %c0_7, %c0_8] : memref<1x16x64xf32, #tpu.memory_space<vmem>>, vector<1x16x64xf32>
    %9 = vector.shape_cast %8 : vector<1x16x64xf32> to vector<16x64xf32>
    %10 = vector.shape_cast %7 : vector<16x64xf32> to vector<1x16x64xf32>
    tpu.vector_store %arg5[%c0_6, %c0_7, %c0_8], %10 {strides = array<i32>} : memref<1x16x64xf32, #tpu.memory_space<vmem>>, vector<1x16x64xf32>,
    %11 = vector.extract_strided_slice %6 {offsets = [16, 0], sizes = [16, 64], strides = [1, 1]} : vector<32x64xf32> to vector<16x64xf32>
    %c0_9 = arith.constant 0 : index
    %c0_10 = arith.constant 0 : index
    %c0_11 = arith.constant 0 : index
    %12 = vector.load %arg6[%c0_9, %c0_10, %c0_11] : memref<1x16x64xf32, #tpu.memory_space<vmem>>, vector<1x16x64xf32>
    %13 = vector.shape_cast %12 : vector<1x16x64xf32> to vector<16x64xf32>
    %14 = vector.shape_cast %11 : vector<16x64xf32> to vector<1x16x64xf32>
    tpu.vector_store %arg6[%c0_9, %c0_10, %c0_11], %14 {strides = array<i32>} : memref<1x16x64xf32, #tpu.memory_space<vmem>>, vector<1x16x64xf32>,
    %c0_12 = arith.constant 0 : index
    %c0_13 = arith.constant 0 : index
    %c0_14 = arith.constant 0 : index
    %15 = vector.load %arg2[%c0_12, %c0_13, %c0_14] : memref<1x4x64xf32, #tpu.memory_space<vmem>>, vector<1x4x64xf32>
    %16 = vector.shape_cast %15 : vector<1x4x64xf32> to vector<4x64xf32>
    %17 = arith.addf %1, %16 : vector<4x64xf32>
    %cst_15 = arith.constant dense<0xFF800000> : vector<64xf32>
    %18 = vector.multi_reduction <maximumf>, %17, %cst_15 [0] : vector<4x64xf32> to vector<64xf32>
    %19 = vector.shape_cast %18 : vector<64xf32> to vector<1x64xf32>
    %c0_16 = arith.constant 0 : index
    %c0_17 = arith.constant 0 : index
    %c0_18 = arith.constant 0 : index
    %20 = vector.load %arg7[%c0_16, %c0_17, %c0_18] : memref<1x1x64xf32, #tpu.memory_space<vmem>>, vector<1x1x64xf32>
    %21 = vector.shape_cast %20 : vector<1x1x64xf32> to vector<1x64xf32>
    %22 = vector.shape_cast %19 : vector<1x64xf32> to vector<1x1x64xf32>
    tpu.vector_store %arg7[%c0_16, %c0_17, %c0_18], %22 {strides = array<i32>} : memref<1x1x64xf32, #tpu.memory_space<vmem>>, vector<1x1x64xf32>,
    return
  }
  func.func @transform_0(%arg0: i32) -> (i32, i32, i32) {
    %c0_i32 = arith.constant 0 : i32
    %c0_i32_0 = arith.constant 0 : i32
    %c0_i32_1 = arith.constant 0 : i32
    return %arg0, %c0_i32, %c0_i32_0 : i32, i32, i32
  }
  func.func @transform_1(%arg0: i32) -> (i32, i32, i32) {
    %c0_i32 = arith.constant 0 : i32
    %c0_i32_0 = arith.constant 0 : i32
    %c0_i32_1 = arith.constant 0 : i32
    return %arg0, %c0_i32, %c0_i32_0 : i32, i32, i32
  }
  func.func @transform_2(%arg0: i32) -> (i32, i32) {
    %c0_i32 = arith.constant 0 : i32
    %c0_i32_0 = arith.constant 0 : i32
    %c0_i32_1 = arith.constant 0 : i32
    return %c0_i32, %c0_i32_0 : i32, i32
  }
  func.func @transform_3(%arg0: i32) -> (i32, i32) {
    %c0_i32 = arith.constant 0 : i32
    %c0_i32_0 = arith.constant 0 : i32
    %c0_i32_1 = arith.constant 0 : i32
    return %c0_i32, %c0_i32_0 : i32, i32
  }
  func.func @transform_4(%arg0: i32) -> (i32, i32, i32) {
    %c0_i32 = arith.constant 0 : i32
    %c0_i32_0 = arith.constant 0 : i32
    %c0_i32_1 = arith.constant 0 : i32
    return %arg0, %c0_i32, %c0_i32_0 : i32, i32, i32
  }
  func.func @transform_5(%arg0: i32) -> (i32, i32, i32) {
    %c0_i32 = arith.constant 0 : i32
    %c0_i32_0 = arith.constant 0 : i32
    %c0_i32_1 = arith.constant 0 : i32
    return %arg0, %c0_i32, %c0_i32_0 : i32, i32, i32
  }
  func.func @transform_6(%arg0: i32) -> (i32, i32, i32) {
    %c0_i32 = arith.constant 0 : i32
    %c0_i32_0 = arith.constant 0 : i32
    %c0_i32_1 = arith.constant 0 : i32
    return %arg0, %c0_i32, %c0_i32_0 : i32, i32, i32
  }
}

</mosaic_0001>

<llo_original>
// kernel: tpu_custom_call.1
$region0: #{tpu_custom_call.1}
  #allocation0 [shape = 'u32[]', space=smem, size = 0x4, offset = 0x4, fixed_abs, tag = 'smem constant byte address 0x4 - core index']
  #allocation1 [shape = 'u32[144,128]{1,0:T(1,128)}', space=vmem, size = 0x12000, scoped, tag = 'internal scratch']
  %s0 = inlined_call_operand.vmem [shape: f32[2,4,64], index: 0, kind: input, shape index: {}]
  %s1 = inlined_call_operand.vmem [shape: f32[2,4,64], index: 1, kind: input, shape index: {}]
  %s2 = inlined_call_operand.vmem [shape: f32[32,4], index: 2, kind: input, shape index: {}]
  %s3 = inlined_call_operand.vmem [shape: f32[32,1], index: 3, kind: input, shape index: {}]
  %s4 = inlined_call_operand.hbm [shape: f32[2,16,64], index: 4, kind: output, shape index: {0}]
  %s5 = inlined_call_operand.hbm [shape: f32[2,16,64], index: 5, kind: output, shape index: {1}]
  %s6 = inlined_call_operand.hbm [shape: f32[2,1,64], index: 6, kind: output, shape index: {2}]
  %7 = xla_tuple %s4, %s5, %s6
  %s8 = sld [smem:[#allocation0]]
  $region65: #{tpu_custom_call.1} parent=0
    _
  %s10 = ssub.s32 1, %s8
  %s11 = scalar_select 0, %s10, %s8
  $region1: #{tpu_custom_call.1} parent=0
    #allocation2 [shape = 'u8[16384]{0}', space=vmem, size = 0x4000, scoped, tag = 'output window, operand 0']
    #allocation3 [shape = 's32[2]{0}', space=sflag, size = 0x8, scoped, tag = 'scoped memory for tpu_custom_call.1']
    #allocation4 [shape = 'u8[16384]{0}', space=vmem, size = 0x4000, scoped, tag = 'output window, operand 1']
    #allocation5 [shape = 's32[2]{0}', space=sflag, size = 0x8, scoped, tag = 'scoped memory for tpu_custom_call.1']
    #allocation6 [shape = 'u8[1024]{0}', space=vmem, size = 0x400, scoped, tag = 'output window, operand 2']
    %12 = vsyncpa [#allocation3], 0
    %s13 = scalar_lea.sflag [#allocation3], 1
    %14 = vsyncpa %s13, 0
    %15 = vsyncpa [#allocation5], 0
    %s16 = scalar_lea.sflag [#allocation5], 1
    %17 = vsyncpa %s16, 0
    loop: start=0, step=1, limit=4
    $region2: #{tpu_custom_call.1} parent=1 // loop_pre_header
      _
    $region3: #{tpu_custom_call.1} parent=1 // loop_header
      %s19 = sphi 0, %s23
      %p20 = scmp.ge.s32.totalorder %s19, 4
      %s29 = sphi 0, %s31
      %s32 = sphi 0, %s29
      %s33 = sphi 0, %s32
      %s49 = sphi 0, %s33
      %s55 = sphi 0, %s57
      %s58 = sphi 0, %s55
      %s59 = sphi 0, %s58
      %s75 = sphi 0, %s59
      %s79 = sphi 0, %s79
      %s81 = sphi 0, %s79
      %s82 = sphi 0, %s81
      %s96 = sphi 0, %s82
      %s100 = sphi 0, %s100
      %s102 = sphi 0, %s100
      %s103 = sphi 0, %s102
      %s117 = sphi 0, %s103
      %s123 = sphi 0, %s125
      %s126 = sphi 0, %s123
      %s127 = sphi 0, %s126
      %s143 = sphi 0, %s127
      %s149 = sphi 0, %s151
      %s152 = sphi 0, %s149
      %s153 = sphi 0, %s152
      %s169 = sphi 0, %s153
      %s175 = sphi 0, %s177
      %s178 = sphi 0, %s175
      %s179 = sphi 0, %s178
      %s195 = sphi 0, %s179
    $region4: #{tpu_custom_call.1} parent=1 // loop_header_branch
      %22 = sbr.rel (%p20) target = $region8
    $region5: #{tpu_custom_call.1} parent=1 // loop_body
      %s24 = ssub.s32 %s19, 1
      %s25 = ssub.s32 %s19, 2
      %s26 = sadd.s32 %s19, 1
      %s27 = ssub.s32 %s19, %s26
      %p28 = scmp.eq.s32.totalorder %s27, 0
      %s30 = sadd.s32 %s29, 1
      %s31 = scalar_select %p28, %s29, %s30
      %p34 = pneg %p28
      %p35 = scmp.eq.s32.totalorder %s19, 1
      %p36 = por %p34, %p35
      %p37 = scmp.ne.s32.totalorder %s29, %s32
      %p38 = scmp.eq.s32.totalorder %s19, 0
      %p39 = por %p37, %p38
      %p40 = scmp.ne.s32.totalorder %s29, %s32
      %p41 = scmp.eq.s32.totalorder %s24, 1
      %p42 = por %p40, %p41
      %p43 = scmp.ne.s32.totalorder %s32, %s33
      %p44 = scmp.eq.s32.totalorder %s24, 0
      %p45 = por %p43, %p44
      %p46 = scmp.ne.s32.totalorder %s32, %s33
      %p47 = scmp.eq.s32.totalorder %s25, 1
      %p48 = por %p46, %p47
      %p50 = scmp.ne.s32.totalorder %s33, %s49
      %p51 = scmp.eq.s32.totalorder %s25, 0
      %p52 = por %p50, %p51
      %s53 = ssub.s32 %s19, %s26
      %p54 = scmp.eq.s32.totalorder %s53, 0
      %s56 = sadd.s32 %s55, 1
      %s57 = scalar_select %p54, %s55, %s56
      %p60 = pneg %p54
      %p61 = scmp.eq.s32.totalorder %s19, 1
      %p62 = por %p60, %p61
      %p63 = scmp.ne.s32.totalorder %s55, %s58
      %p64 = scmp.eq.s32.totalorder %s19, 0
      %p65 = por %p63, %p64
      %p66 = scmp.ne.s32.totalorder %s55, %s58
      %p67 = scmp.eq.s32.totalorder %s24, 1
      %p68 = por %p66, %p67
      %p69 = scmp.ne.s32.totalorder %s58, %s59
      %p70 = scmp.eq.s32.totalorder %s24, 0
      %p71 = por %p69, %p70
      %p72 = scmp.ne.s32.totalorder %s58, %s59
      %p73 = scmp.eq.s32.totalorder %s25, 1
      %p74 = por %p72, %p73
      %p76 = scmp.ne.s32.totalorder %s59, %s75
      %p77 = scmp.eq.s32.totalorder %s25, 0
      %p78 = por %p76, %p77
      %s80 = sadd.s32 %s79, 1
      %p83 = scmp.eq.s32.totalorder %s19, 1
      %p84 = scmp.ne.s32.totalorder %s79, %s81
      %p85 = scmp.eq.s32.totalorder %s19, 0
      %p86 = por %p84, %p85
      %p87 = scmp.ne.s32.totalorder %s79, %s81
      %p88 = scmp.eq.s32.totalorder %s24, 1
      %p89 = por %p87, %p88
      %p90 = scmp.ne.s32.totalorder %s81, %s82
      %p91 = scmp.eq.s32.totalorder %s24, 0
      %p92 = por %p90, %p91
      %p93 = scmp.ne.s32.totalorder %s81, %s82
      %p94 = scmp.eq.s32.totalorder %s25, 1
      %p95 = por %p93, %p94
      %p97 = scmp.ne.s32.totalorder %s82, %s96
      %p98 = scmp.eq.s32.totalorder %s25, 0
      %p99 = por %p97, %p98
      %s101 = sadd.s32 %s100, 1
      %p104 = scmp.eq.s32.totalorder %s19, 1
      %p105 = scmp.ne.s32.totalorder %s100, %s102
      %p106 = scmp.eq.s32.totalorder %s19, 0
      %p107 = por %p105, %p106
      %p108 = scmp.ne.s32.totalorder %s100, %s102
      %p109 = scmp.eq.s32.totalorder %s24, 1
      %p110 = por %p108, %p109
      %p111 = scmp.ne.s32.totalorder %s102, %s103
      %p112 = scmp.eq.s32.totalorder %s24, 0
      %p113 = por %p111, %p112
      %p114 = scmp.ne.s32.totalorder %s102, %s103
      %p115 = scmp.eq.s32.totalorder %s25, 1
      %p116 = por %p114, %p115
      %p118 = scmp.ne.s32.totalorder %s103, %s117
      %p119 = scmp.eq.s32.totalorder %s25, 0
      %p120 = por %p118, %p119
      %s121 = ssub.s32 %s19, %s26
      %p122 = scmp.eq.s32.totalorder %s121, 0
      %s124 = sadd.s32 %s123, 1
      %s125 = scalar_select %p122, %s123, %s124
      %p128 = pneg %p122
      %p129 = scmp.eq.s32.totalorder %s19, 1
      %p130 = por %p128, %p129
      %p131 = scmp.ne.s32.totalorder %s123, %s126
      %p132 = scmp.eq.s32.totalorder %s19, 0
      %p133 = por %p131, %p132
      %p134 = scmp.ne.s32.totalorder %s123, %s126
      %p135 = scmp.eq.s32.totalorder %s24, 1
      %p136 = por %p134, %p135
      %p137 = scmp.ne.s32.totalorder %s126, %s127
      %p138 = scmp.eq.s32.totalorder %s24, 0
      %p139 = por %p137, %p138
      %p140 = scmp.ne.s32.totalorder %s126, %s127
      %p141 = scmp.eq.s32.totalorder %s25, 1
      %p142 = por %p140, %p141
      %p144 = scmp.ne.s32.totalorder %s127, %s143
      %p145 = scmp.eq.s32.totalorder %s25, 0
      %p146 = por %p144, %p145
      %s147 = ssub.s32 %s19, %s26
      %p148 = scmp.eq.s32.totalorder %s147, 0
      %s150 = sadd.s32 %s149, 1
      %s151 = scalar_select %p148, %s149, %s150
      %p154 = pneg %p148
      %p155 = scmp.eq.s32.totalorder %s19, 1
      %p156 = por %p154, %p155
      %p157 = scmp.ne.s32.totalorder %s149, %s152
      %p158 = scmp.eq.s32.totalorder %s19, 0
      %p159 = por %p157, %p158
      %p160 = scmp.ne.s32.totalorder %s149, %s152
      %p161 = scmp.eq.s32.totalorder %s24, 1
      %p162 = por %p160, %p161
      %p163 = scmp.ne.s32.totalorder %s152, %s153
      %p164 = scmp.eq.s32.totalorder %s24, 0
      %p165 = por %p163, %p164
      %p166 = scmp.ne.s32.totalorder %s152, %s153
      %p167 = scmp.eq.s32.totalorder %s25, 1
      %p168 = por %p166, %p167
      %p170 = scmp.ne.s32.totalorder %s153, %s169
      %p171 = scmp.eq.s32.totalorder %s25, 0
      %p172 = por %p170, %p171
      %s173 = ssub.s32 %s19, %s26
      %p174 = scmp.eq.s32.totalorder %s173, 0
      %s176 = sadd.s32 %s175, 1
      %s177 = scalar_select %p174, %s175, %s176
      %p180 = pneg %p174
      %p181 = scmp.eq.s32.totalorder %s19, 1
      %p182 = por %p180, %p181
      %p183 = scmp.ne.s32.totalorder %s175, %s178
      %p184 = scmp.eq.s32.totalorder %s19, 0
      %p185 = por %p183, %p184
      %p186 = scmp.ne.s32.totalorder %s175, %s178
      %p187 = scmp.eq.s32.totalorder %s24, 1
      %p188 = por %p186, %p187
      %p189 = scmp.ne.s32.totalorder %s178, %s179
      %p190 = scmp.eq.s32.totalorder %s24, 0
      %p191 = por %p189, %p190
      %p192 = scmp.ne.s32.totalorder %s178, %s179
      %p193 = scmp.eq.s32.totalorder %s25, 1
      %p194 = por %p192, %p193
      %p196 = scmp.ne.s32.totalorder %s179, %s195
      %p197 = scmp.eq.s32.totalorder %s25, 0
      %p198 = por %p196, %p197
      %p199 = scmp.le.s32.totalorder 1, %s19
      %p200 = scmp.lt.s32.totalorder %s19, 3
      %p201 = pnand %p199, %p200
      %p202 = pneg %p201
      // Predicated region
      $region9: #{tpu_custom_call.1} parent=5 // pred_check
        _
      $region10: #{tpu_custom_call.1} parent=5 // pred_check_branch
        %204 = sbr.rel (%p201) target = $region12
      $region11: #{tpu_custom_call.1} parent=5 // pred_region
        %s205 = ssub.s32 %s19, 1
        // Predicated region
        $region13: #{tpu_custom_call.1} parent=11 // pred_check
          %p206 = pneg %p92
        $region14: #{tpu_custom_call.1} parent=11 // pred_check_branch
          %208 = sbr.rel (%p206) target = $region16
        $region15: #{tpu_custom_call.1} parent=11 // pred_region
          _
        $region16: #{tpu_custom_call.1} parent=11 // pred_fallthru
          _
        // Predicated region
        $region17: #{tpu_custom_call.1} parent=11 // pred_check
          %p209 = pneg %p113
        $region18: #{tpu_custom_call.1} parent=11 // pred_check_branch
          %211 = sbr.rel (%p209) target = $region20
        $region19: #{tpu_custom_call.1} parent=11 // pred_region
          _
        $region20: #{tpu_custom_call.1} parent=11 // pred_fallthru
          _
      $region12: #{tpu_custom_call.1} parent=5 // pred_fallthru
        _
      %p212 = scmp.lt.s32.totalorder %s19, 2
      // Predicated region
      $region21: #{tpu_custom_call.1} parent=5 // pred_check
        %p213 = pneg %p212
      $region22: #{tpu_custom_call.1} parent=5 // pred_check_branch
        %215 = sbr.rel (%p213) target = $region24
      $region23: #{tpu_custom_call.1} parent=5 // pred_region
        // Predicated region
        $region25: #{tpu_custom_call.1} parent=23 // pred_check
          %p216 = pneg %p39
        $region26: #{tpu_custom_call.1} parent=23 // pred_check_branch
          %218 = sbr.rel (%p216) target = $region28
        $region27: #{tpu_custom_call.1} parent=23 // pred_region
          %p219 = scmp.lt.s32.totalorder %s19, 1
          %s220 = scalar_select %p219, %s19, 1
          %s221 = smul.addr %s220, 4
          %s222 = scalar_lea.vmem %s0, %s221
        $region28: #{tpu_custom_call.1} parent=23 // pred_fallthru
          _
        // Predicated region
        $region29: #{tpu_custom_call.1} parent=23 // pred_check
          %p223 = pneg %p65
        $region30: #{tpu_custom_call.1} parent=23 // pred_check_branch
          %225 = sbr.rel (%p223) target = $region32
        $region31: #{tpu_custom_call.1} parent=23 // pred_region
          %p226 = scmp.lt.s32.totalorder %s19, 1
          %s227 = scalar_select %p226, %s19, 1
          %s228 = smul.addr %s227, 4
          %s229 = scalar_lea.vmem %s1, %s228
        $region32: #{tpu_custom_call.1} parent=23 // pred_fallthru
          _
      $region24: #{tpu_custom_call.1} parent=5 // pred_fallthru
        _
      %p230 = scmp.le.s32.totalorder 1, %s19
      %p231 = scmp.lt.s32.totalorder %s19, 3
      %p232 = pnand %p230, %p231
      %p233 = pneg %p232
      // Predicated region
      $region33: #{tpu_custom_call.1} parent=5 // pred_check
        _
      $region34: #{tpu_custom_call.1} parent=5 // pred_check_branch
        %235 = sbr.rel (%p232) target = $region36
      $region35: #{tpu_custom_call.1} parent=5 // pred_region
        %s236 = ssub.s32 %s19, 1
        %p237 = scmp.lt.s32.totalorder %s24, 1
        %s238 = scalar_select %p237, %s24, 1
        %s239 = smul.addr %s238, 4
        %s240 = scalar_lea.vmem %s0, %s239
        %p241 = pneg %p45
        %p242 = pneg %p42
        %p243 = scmp.lt.s32.totalorder %s24, 1
        %s244 = scalar_select %p243, %s24, 1
        %s245 = smul.addr %s244, 4
        %s246 = scalar_lea.vmem %s1, %s245
        %p247 = pneg %p71
        %p248 = pneg %p68
        %p249 = pneg %p92
        %p250 = pneg %p89
        %p251 = pneg %p113
        %p252 = pneg %p110
        %p253 = pneg %p139
        %p254 = pneg %p136
        %s255 = sand.u32 %s126, 1
        %s256 = scalar_lea.sflag [#allocation3], %s255
        %s257 = sand.u32 %s126, 1
        %s258 = smul.addr %s257, 16
        %s259 = scalar_lea.vmem [#allocation2], %s258
        %p260 = pneg %p165
        %p261 = pneg %p162
        %s262 = sand.u32 %s24, 1
        %s263 = scalar_lea.sflag [#allocation5], %s262
        %s264 = sand.u32 %s152, 1
        %s265 = smul.addr %s264, 16
        %s266 = scalar_lea.vmem [#allocation4], %s265
        %p267 = pneg %p191
        %p268 = pneg %p188
        %s269 = sand.u32 %s24, 1
        %s270 = scalar_lea.sflag [#allocation5], %s269
        %s271 = sand.u32 %s178, 1
        %s272 = scalar_lea.vmem [#allocation6], %s271
        %p273 = scmp.lt.s32.totalorder %s24, 1
        %s274 = scalar_select %p273, %s24, 1
        %s275 = smul.addr %s274, 4
        %s276 = scalar_lea.vmem %s0, %s275
        %p277 = scmp.lt.s32.totalorder %s24, 1
        %s278 = scalar_select %p277, %s24, 1
        %s279 = smul.addr %s278, 4
        %s280 = scalar_lea.vmem %s1, %s279
        %v281 = vld [vmem:[%s276] sm:$0xf]
        %v282 = vld [vmem:[%s2] sm:$0xff]
        %v283 = vld [vmem:[%s2 + $0x8] sm:$0xff]
        %v284 = vld [vmem:[%s2 + $0x10] sm:$0xff]
        %v285 = vld [vmem:[%s2 + $0x18] sm:$0xff]
        %v286 = vld [vmem:[%s3] sm:$0xff]
        %v287 = vld [vmem:[%s3 + $0x8] sm:$0xff]
        %v288 = vld [vmem:[%s3 + $0x10] sm:$0xff]
        %v289 = vld [vmem:[%s3 + $0x18] sm:$0xff]
        %291 = vset.pattern.permute.xlu0 0
        %292 = vperm.xlu0 %291, %v286
        %v293 = vpop.permute.xlu0 %292
        %296 = vset.pattern.permute.xlu0 0
        %297 = vperm.xlu0 %296, %v287
        %v298 = vpop.permute.xlu0 %297
        %301 = vset.pattern.permute.xlu0 0
        %302 = vperm.xlu0 %301, %v288
        %v303 = vpop.permute.xlu0 %302
        %306 = vset.pattern.permute.xlu0 0
        %307 = vperm.xlu0 %306, %v289
        %v308 = vpop.permute.xlu0 %307
        %vm310 = vcmask 31744
        %v312 = vsel %vm310, %v282, 0
        %v315 = vsel %vm310, %v283, 0
        %v318 = vsel %vm310, %v284, 0
        %v321 = vsel %vm310, %v285, 0
        %vm323 = vcmask 1043456
        %v325 = vsel %vm323, %v281, 0
        %327 = vmatprep.subr.mxu0 0.0
        %328 = vmatpush1.msra.mxu0 %v325
        %329 = vmatprep.subr.mxu0 0.0
        %330 = vmatpush1.msra.mxu0 0.0
        %331 = vmatprep.subr.mxu0 0.0
        %332 = vmatpush1.msra.mxu0 0.0
        %333 = vmatprep.subr.mxu0 0.0
        %334 = vmatpush1.msra.mxu0 0.0
        %335 = vmatprep.subr.mxu0 0.0
        %336 = vmatpush1.msra.mxu0 0.0
        %337 = vmatprep.subr.mxu0 0.0
        %338 = vmatpush1.msra.mxu0 0.0
        %339 = vmatprep.subr.mxu0 0.0
        %340 = vmatpush1.msra.mxu0 0.0
        %341 = vmatprep.subr.mxu0 0.0
        %342 = vmatpush1.msra.mxu0 0.0
        %343 = vmatprep.subr.mxu0 0.0
        %344 = vmatpush1.msra.mxu0 0.0
        %345 = vmatprep.subr.mxu0 0.0
        %346 = vmatpush1.msra.mxu0 0.0
        %347 = vmatprep.subr.mxu0 0.0
        %348 = vmatpush1.msra.mxu0 0.0
        %349 = vmatprep.subr.mxu0 0.0
        %350 = vmatpush1.msra.mxu0 0.0
        %351 = vmatprep.subr.mxu0 0.0
        %352 = vmatpush1.msra.mxu0 0.0
        %353 = vmatprep.subr.mxu0 0.0
        %354 = vmatpush1.msra.mxu0 0.0
        %355 = vmatprep.subr.mxu0 0.0
        %356 = vmatpush1.msra.mxu0 0.0
        %357 = vmatprep.subr.mxu0 0.0
        %358 = vmatpush1.msra.mxu0 0.0
        %359 = vmatprep.subr.mxu0 0.0
        %360 = vmatpush1.msra.mxu0 0.0
        %361 = vmatprep.subr.mxu0 0.0
        %362 = vmatpush1.msra.mxu0 0.0
        %363 = vmatprep.subr.mxu0 0.0
        %364 = vmatpush1.msra.mxu0 0.0
        %365 = vmatprep.subr.mxu0 0.0
        %366 = vmatpush1.msra.mxu0 0.0
        %367 = vmatprep.subr.mxu0 0.0
        %368 = vmatpush1.msra.mxu0 0.0
        %369 = vmatprep.subr.mxu0 0.0
        %370 = vmatpush1.msra.mxu0 0.0
        %371 = vmatprep.subr.mxu0 0.0
        %372 = vmatpush1.msra.mxu0 0.0
        %373 = vmatprep.subr.mxu0 0.0
        %374 = vmatpush1.msra.mxu0 0.0
        %375 = vmatprep.subr.mxu0 0.0
        %376 = vmatpush1.msra.mxu0 0.0
        %377 = vmatprep.subr.mxu0 0.0
        %378 = vmatpush1.msra.mxu0 0.0
        %379 = vmatprep.subr.mxu0 0.0
        %380 = vmatpush1.msra.mxu0 0.0
        %381 = vmatprep.subr.mxu0 0.0
        %382 = vmatpush1.msra.mxu0 0.0
        %383 = vmatprep.subr.mxu0 0.0
        %384 = vmatpush1.msra.mxu0 0.0
        %385 = vmatprep.subr.mxu0 0.0
        %386 = vmatpush1.msra.mxu0 0.0
        %387 = vmatprep.subr.mxu0 0.0
        %388 = vmatpush1.msra.mxu0 0.0
        %389 = vmatprep.subr.mxu0 0.0
        %390 = vmatpush1.msra.mxu0 0.0
        %391 = vmatprep.mubr.f32.mxu0 0.0
        %392 = vmatmul.mubr.f32.gmra.mrb[0].mxu0 %v312
        %v393 = vpop.f32.mrb[0].mxu0
        %v394 = vadd.f32 %v293, %v393
        %v395 = vpop.f32.mrb[0].mxu0
        %396 = vmatprep.mubr.f32.mxu0 0.0
        %397 = vmatmul.mubr.f32.gmra.mrb[0].mxu0 %v315
        %v398 = vpop.f32.mrb[0].mxu0
        %v399 = vadd.f32 %v298, %v398
        %v400 = vpop.f32.mrb[0].mxu0
        %401 = vmatprep.mubr.f32.mxu0 0.0
        %402 = vmatmul.mubr.f32.gmra.mrb[0].mxu0 %v318
        %v403 = vpop.f32.mrb[0].mxu0
        %v404 = vadd.f32 %v303, %v403
        %v405 = vpop.f32.mrb[0].mxu0
        %406 = vmatprep.mubr.f32.mxu0 0.0
        %407 = vmatmul.mubr.f32.gmra.mrb[0].mxu0 %v321
        %v408 = vpop.f32.mrb[0].mxu0
        %v409 = vadd.f32 %v308, %v408
        %v410 = vpop.f32.mrb[0].mxu0
        %411 = vdwg.mxu0
        %vm412 = vcmask 523264
        %413 = vst.msk [vmem:[%s259] sm:$0xff] %vm412, %v394
        %414 = vst.msk [vmem:[%s259 + $0x8] sm:$0xff] %vm412, %v399
        %415 = vst.msk [vmem:[%s266] sm:$0xff] %vm412, %v404
        %416 = vst.msk [vmem:[%s266 + $0x8] sm:$0xff] %vm412, %v409
        %v417 = vld [vmem:[%s280] sm:$0xf]
        %v418 = vadd.f32 %v281, %v417
        %vm419 = vcmask 519168
        %v420 = vsel %vm419, %v418, -inf
        %v421 = vrot.slane %v420, 4
        %v422 = vmax.f32 %v420, %v421
        %v423 = vrot.slane %v422, 2
        %v424 = vmax.f32 %v422, %v423
        %v425 = vrot.slane %v424, 1
        %v426 = vmax.f32 %v424, %v425
        %vm427 = vcmask 516096
        %428 = vst.msk [vmem:[%s272] sm:$0x1] %vm427, %v426
        %s429 = sand.u32 %s126, 1
        %s430 = scalar_lea.sflag [#allocation3], %s429
        %s431 = sand.u32 %s126, 1
        %s432 = smul.addr %s431, 16
        %s433 = scalar_lea.vmem [#allocation2], %s432
        %s434 = sand.u32 %s24, 1
        %s435 = scalar_lea.sflag [#allocation5], %s434
        %s436 = sand.u32 %s152, 1
        %s437 = smul.addr %s436, 16
        %s438 = scalar_lea.vmem [#allocation4], %s437
        %s439 = sand.u32 %s24, 1
        %s440 = scalar_lea.sflag [#allocation5], %s439
        %s441 = sand.u32 %s178, 1
        %s442 = scalar_lea.vmem [#allocation6], %s441
        // Predicated region
        $region37: #{tpu_custom_call.1} parent=35 // pred_check
          %p443 = pneg %p136
        $region38: #{tpu_custom_call.1} parent=35 // pred_check_branch
          %445 = sbr.rel (%p443) target = $region40
        $region39: #{tpu_custom_call.1} parent=35 // pred_region
          %s447 = ssub.s32 256, 256
          %448 = vsyncadd %s430, %s447
          %s449 = smul.addr %s24, 2
          %s450 = smul.addr %s449, 128
          %s451 = scalar_lea.hbm %s4, %s450
          %s452 = sshll.u32 %s433, 4
          %s453 = int_to_ptr.vmem [resolvable:$true] %s452
          %458 = dma.vmem_to_hbm [thread:$0]  %s453, 256, %s451, %s430, 128, 128, 8
        $region40: #{tpu_custom_call.1} parent=35 // pred_fallthru
          _
        // Predicated region
        $region41: #{tpu_custom_call.1} parent=35 // pred_check
          %p459 = pneg %p162
        $region42: #{tpu_custom_call.1} parent=35 // pred_check_branch
          %461 = sbr.rel (%p459) target = $region44
        $region43: #{tpu_custom_call.1} parent=35 // pred_region
          %s463 = ssub.s32 256, 256
          %464 = vsyncadd %s435, %s463
          %s465 = smul.addr %s24, 2
          %s466 = smul.addr %s465, 128
          %s467 = scalar_lea.hbm %s5, %s466
          %s468 = sshll.u32 %s438, 4
          %s469 = int_to_ptr.vmem [resolvable:$true] %s468
          %474 = dma.vmem_to_hbm [thread:$0]  %s469, 256, %s467, %s435, 128, 128, 8
        $region44: #{tpu_custom_call.1} parent=35 // pred_fallthru
          _
        // Predicated region
        $region45: #{tpu_custom_call.1} parent=35 // pred_check
          %p475 = pneg %p188
        $region46: #{tpu_custom_call.1} parent=35 // pred_check_branch
          %477 = sbr.rel (%p475) target = $region48
        $region47: #{tpu_custom_call.1} parent=35 // pred_region
          %s479 = ssub.s32 16, 16
          %480 = vsyncadd %s440, %s479
          %s481 = smul.addr %s24, 16
          %s482 = scalar_lea.hbm %s6, %s481
          %s484 = sshll.u32 %s442, 4
          %s485 = int_to_ptr.vmem [resolvable:$true] %s484
          %487 = dma.vmem_to_hbm [thread:$0]  %s485, 16, %s482, %s440
        $region48: #{tpu_custom_call.1} parent=35 // pred_fallthru
          _
      $region36: #{tpu_custom_call.1} parent=5 // pred_fallthru
        _
      %p488 = scmp.le.s32.totalorder 2, %s19
      // Predicated region
      $region49: #{tpu_custom_call.1} parent=5 // pred_check
        %p489 = pneg %p488
      $region50: #{tpu_custom_call.1} parent=5 // pred_check_branch
        %491 = sbr.rel (%p489) target = $region52
      $region51: #{tpu_custom_call.1} parent=5 // pred_region
        %s492 = ssub.s32 %s19, 2
        // Predicated region
        $region53: #{tpu_custom_call.1} parent=51 // pred_check
          %p493 = pneg %p142
        $region54: #{tpu_custom_call.1} parent=51 // pred_check_branch
          %495 = sbr.rel (%p493) target = $region56
        $region55: #{tpu_custom_call.1} parent=51 // pred_region
          %s496 = sand.u32 %s127, 1
          %s497 = scalar_lea.sflag [#allocation3], %s496
          %s498 = sand.u32 %s127, 1
          %s499 = smul.addr %s498, 16
          %s500 = scalar_lea.vmem [#allocation2], %s499
          %501 = dma.done %s497, 256
        $region56: #{tpu_custom_call.1} parent=51 // pred_fallthru
          _
        // Predicated region
        $region57: #{tpu_custom_call.1} parent=51 // pred_check
          %p502 = pneg %p168
        $region58: #{tpu_custom_call.1} parent=51 // pred_check_branch
          %504 = sbr.rel (%p502) target = $region60
        $region59: #{tpu_custom_call.1} parent=51 // pred_region
          %s505 = sand.u32 %s25, 1
          %s506 = scalar_lea.sflag [#allocation5], %s505
          %s507 = sand.u32 %s153, 1
          %s508 = smul.addr %s507, 16
          %s509 = scalar_lea.vmem [#allocation4], %s508
          %510 = dma.done %s506, 256
        $region60: #{tpu_custom_call.1} parent=51 // pred_fallthru
          _
        // Predicated region
        $region61: #{tpu_custom_call.1} parent=51 // pred_check
          %p511 = pneg %p194
        $region62: #{tpu_custom_call.1} parent=51 // pred_check_branch
          %513 = sbr.rel (%p511) target = $region64
        $region63: #{tpu_custom_call.1} parent=51 // pred_region
          %s514 = sand.u32 %s25, 1
          %s515 = scalar_lea.sflag [#allocation5], %s514
          %s516 = sand.u32 %s179, 1
          %s517 = scalar_lea.vmem [#allocation6], %s516
          %518 = dma.done %s515, 16
        $region64: #{tpu_custom_call.1} parent=51 // pred_fallthru
          _
      $region52: #{tpu_custom_call.1} parent=5 // pred_fallthru
        _
    $region6: #{tpu_custom_call.1} parent=1 // loop_footer
      %s23 = sadd.s32 1, %s19
    $region7: #{tpu_custom_call.1} parent=1 // loop_footer_branch
      %18 = sbr.rel target = $region3
    $region8: #{tpu_custom_call.1} parent=1 // loop_exit
      _
    %519 = vsyncpa [#allocation3], 1
    %s520 = scalar_lea.sflag [#allocation3], 1
    %521 = vsyncpa %s520, 1
    %522 = vsyncpa [#allocation5], 1
    %s523 = scalar_lea.sflag [#allocation5], 1
    %524 = vsyncpa %s523, 1

</llo_original>
